<compile_context>
chip_gen: v7x
topology: tpu7x:2x2x1
jax: 0.10.0
libtpu: 0.0.40
codegen_flags: <defaults>
</compile_context>

<pallas_src>
import functools

import numpy as np
import jax
import jax.numpy as jnp
from jax.experimental import pallas as pl
from jax.experimental.pallas import tpu as pltpu


def _round_up(a, b):
    return (a + b - 1) // b * b


def _ldam_kernel(x_ref, tgt_ref, sm_ref, o_ref, acc_ref, *,
                 s, n_valid, tiles_per_split, mask_padding):
    p = pl.program_id(0)          # parallel batch split (megacore on v7x)
    i = pl.program_id(1)          # sequential tile within the split

    tb, C = x_ref.shape

    @pl.when(i == 0)
    def _():
        acc_ref[...] = jnp.zeros_like(acc_ref)

    # In-kernel upcast: stream bf16/f32 logits from HBM as-is, compute in f32.
    x = x_ref[...].astype(jnp.float32)               # (tb, C)
    sm = sm_ref[...]                                 # (1, C) f32, pre-scaled s*m

    # Resident targets: whole (padded) batch lives in VMEM once; slice per tile.
    row_start = (p * tiles_per_split + i) * tb
    start = pl.multiple_of(row_start, 8)
    tgt = tgt_ref[pl.ds(start, tb), :]               # (tb, 1) int32

    # Boolean target mask (no f32 one-hot, no matmul gather).
    col = jax.lax.broadcasted_iota(jnp.int32, (tb, C), 1)
    is_tgt = col == tgt                              # (tb, C) bool

    # z = s*x everywhere, s*x - s*m[target] at the target column.
    sx = s * x
    z = jnp.where(is_tgt, sx - sm, sx)               # (tb, C) f32

    # Fused, numerically-stable CE: loss_i = log(sum exp(zc_i)) - zc_i[target].
    zmax = jnp.max(z, axis=1, keepdims=True)         # (tb, 1)
    zc = z - zmax
    sumexp = jnp.sum(jnp.exp(zc), axis=1, keepdims=True)
    z_tgt = jnp.sum(jnp.where(is_tgt, zc, 0.0), axis=1, keepdims=True)
    row_loss = jnp.log(sumexp) - z_tgt               # (tb, 1)

    if mask_padding:
        row = row_start + jax.lax.broadcasted_iota(jnp.int32, (tb, 1), 0)
        row_loss = jnp.where(row < n_valid, row_loss, 0.0)

    # Deferred reduction: accumulate per-row losses, reduce once at the end.
    acc_ref[...] += row_loss

    @pl.when(i == tiles_per_split - 1)
    def _():
        o_ref[...] = jnp.zeros_like(o_ref) + jnp.sum(acc_ref[...])


def ldam_loss(x, target, m_list, s=30.0, tb=None):
    """LDAM loss forward (weight=None, mean reduction).

    x: (B, C) logits, f32 or bf16 (bf16 halves the HBM bytes streamed).
    target: (B,) int labels.  m_list: (C,) f32 per-class margins.
    """
    B, C = x.shape
    itemsize = x.dtype.itemsize
    pack = max(8, 32 // (8 * itemsize) * 8)          # sublane pack: 8 f32, 16 bf16

    # Generation-aware VMEM budget (v7x: 64 MiB physical, v5e/v6e: 128 MiB).
    try:
        cap = int(getattr(pltpu.get_tpu_info(), "vmem_capacity_bytes", 0)) or (64 << 20)
    except Exception:
        cap = 64 << 20
    budget = min(int(cap * 0.45), 100 << 20)

    C_lane = _round_up(C, 128)

    def vmem_est(tb_, bpad_):
        return (2 * tb_ * C_lane * itemsize          # double-buffered logits block
                + 3 * tb_ * C_lane * 4               # f32 temporaries (z / mask / exp)
                + 2 * bpad_ * 128 * 4                # resident (B,1) targets (lane-padded)
                + tb_ * 128 * 4                      # (tb,1) f32 accumulator
                + 2 * 8 * C_lane * 4                 # resident margins
                + (1 << 20))                         # headroom

    if tb is None:
        # ~2 MiB logits blocks: large enough to sit near the HBM roofline and
        # amortize the ~0.35us/grid-step overhead.
        tb = max(pack, (2 << 20) // max(1, C * itemsize))
    tb = min(tb, _round_up(B, pack), 4096)
    tb = max(pack, tb // pack * pack)
    while tb > pack and vmem_est(tb, _round_up(B, pack) + 2 * tb) > budget:
        tb = max(pack, (tb // 2) // pack * pack)
    # TODO(synk): for very large C (when even tb == pack overflows the budget),
    # add a second "arbitrary" grid axis over C with online-logsumexp scratches.

    n_tiles_total = pl.cdiv(B, tb)
    n_splits = 2 if n_tiles_total >= 2 else 1        # feeds both TCs on v7x
    tiles_per_split = pl.cdiv(n_tiles_total, n_splits)
    B_pad = n_splits * tiles_per_split * tb

    x_in = x
    tgt_in = target.reshape(B, 1).astype(jnp.int32)
    if B_pad != B:
        x_in = jnp.pad(x_in, ((0, B_pad - B), (0, 0)))
        tgt_in = jnp.pad(tgt_in, ((0, B_pad - B), (0, 0)))
    sm2d = (jnp.float32(s) * m_list.astype(jnp.float32)).reshape(1, C)

    kernel = functools.partial(
        _ldam_kernel, s=float(s), n_valid=B,
        tiles_per_split=tiles_per_split, mask_padding=(B_pad != B))

    out = pl.pallas_call(
        kernel,
        out_shape=jax.ShapeDtypeStruct((n_splits, 8, 128), jnp.float32),
        grid_spec=pltpu.PrefetchScalarGridSpec(
            num_scalar_prefetch=0,
            grid=(n_splits, tiles_per_split),
            in_specs=[
                pl.BlockSpec((tb, C), lambda p, i: (p * tiles_per_split + i, 0)),
                pl.BlockSpec((B_pad, 1), lambda p, i: (0, 0)),   # resident targets
                pl.BlockSpec((1, C), lambda p, i: (0, 0)),       # resident s*m_list
            ],
            out_specs=pl.BlockSpec((1, 8, 128), lambda p, i: (p, 0, 0)),
            scratch_shapes=[pltpu.VMEM((tb, 1), jnp.float32)],
        ),
        compiler_params=pltpu.CompilerParams(
            dimension_semantics=("parallel", "arbitrary"),
            vmem_limit_bytes=int(budget),
        ),
    )(x_in, tgt_in, sm2d)

    # Per-split partial sums are replicated over the (8,128) slab; take one
    # element per split, sum, and apply the mean reduction.
    return out[:, 0, 0].sum() / jnp.float32(B)


def make_m_list(cls_num_list, max_m=0.5):
    m = 1.0 / np.sqrt(np.sqrt(np.asarray(cls_num_list, dtype=np.float64)))
    m = m * (max_m / np.max(m))
    return jnp.asarray(m, dtype=jnp.float32)


def ldam_loss_ref(x, target, m_list, s=30.0):
    # Pure-JAX reference mirroring the PyTorch module (weight=None).
    B, C = x.shape
    onehot = jax.nn.one_hot(target, C, dtype=jnp.float32)
    batch_m = (m_list[None, :] * onehot).sum(axis=1, keepdims=True)
    out = x - batch_m * onehot
    logp = jax.nn.log_softmax(s * out, axis=1)
    return -jnp.mean(jnp.sum(logp * onehot, axis=1))


if __name__ == "__main__":
    key = jax.random.PRNGKey(0)
    k1, k2, k3, k4, k5, k6 = jax.random.split(key, 6)

    # --- Test 1: f32 logits, single tile (auto tile size covers the batch) ---
    B, C = 24, 16
    cls_num_list = [100, 80, 60, 50, 40, 30, 25, 20, 15, 12, 10, 8, 6, 5, 4, 3]
    m_list = make_m_list(cls_num_list, max_m=0.5)
    x = jax.random.normal(k1, (B, C), dtype=jnp.float32)
    target = jax.random.randint(k2, (B,), 0, C, dtype=jnp.int32)

    loss = jax.block_until_ready(ldam_loss(x, target, m_list, s=30.0))
    ref = jax.block_until_ready(ldam_loss_ref(x, target, m_list, s=30.0))
    assert abs(float(loss) - float(ref)) <= 5e-4 * max(1.0, abs(float(ref))), (
        float(loss), float(ref))

    # --- Test 2: bf16 logits (in-kernel upcast), B not a multiple of the
    #             tile (exercises batch padding + masking), C = one lane vreg ---
    B2, C2 = 20, 128
    m_list2 = make_m_list(np.linspace(200.0, 3.0, C2), max_m=0.5)
    x2 = jax.random.normal(k3, (B2, C2), dtype=jnp.float32).astype(jnp.bfloat16)
    target2 = jax.random.randint(k4, (B2,), 0, C2, dtype=jnp.int32)

    loss2 = jax.block_until_ready(ldam_loss(x2, target2, m_list2, s=30.0))
    ref2 = jax.block_until_ready(
        ldam_loss_ref(x2.astype(jnp.float32), target2, m_list2, s=30.0))
    assert abs(float(loss2) - float(ref2)) <= 5e-4 * max(1.0, abs(float(ref2))), (
        float(loss2), float(ref2))

    # --- Test 3: forced small tile -> multi-tile grid + 2-way parallel split
    #             + padding (exercises the v7x dual-core code path) ---
    B3, C3 = 72, 48
    m_list3 = make_m_list(np.linspace(500.0, 2.0, C3), max_m=0.5)
    x3 = jax.random.normal(k5, (B3, C3), dtype=jnp.float32)
    target3 = jax.random.randint(k6, (B3,), 0, C3, dtype=jnp.int32)

    loss3 = jax.block_until_ready(ldam_loss(x3, target3, m_list3, s=30.0, tb=16))
    ref3 = jax.block_until_ready(ldam_loss_ref(x3, target3, m_list3, s=30.0))
    assert abs(float(loss3) - float(ref3)) <= 5e-4 * max(1.0, abs(float(ref3))), (
        float(loss3), float(ref3))

    print("KERNEL_OK")
</pallas_src>

<mosaic_0001>
module attributes {stable_mosaic.version = 11 : i64} {
  func.func @_ldam_kernel(%arg0: i32, %arg1: i32, %arg2: memref<24x16xf32, #tpu.memory_space<vmem>>, %arg3: memref<24x1xi32, #tpu.memory_space<vmem>>, %arg4: memref<1x16xf32, #tpu.memory_space<vmem>>, %arg5: memref<1x8x128xf32, #tpu.memory_space<vmem>>, %arg6: memref<24x1xf32, #tpu.memory_space<vmem>>) attributes {dimension_semantics = [#tpu.dimension_semantics<parallel>, #tpu.dimension_semantics<arbitrary>], iteration_bounds = array<i64: 1, 1>, scalar_prefetch = 0 : i64, scratch_operands = 1 : i64, tpu.core_type = #tpu.core_type<tc>, window_params = [{transform_indices = @transform_0, window_bounds = array<i64: 24, 16>}, {pipeline_mode = #tpu.pipeline_mode<synchronous>, transform_indices = @transform_1, window_bounds = array<i64: 24, 1>}, {pipeline_mode = #tpu.pipeline_mode<synchronous>, transform_indices = @transform_2, window_bounds = array<i64: 1, 16>}, {transform_indices = @transform_3, window_bounds = array<i64: 1, 8, 128>}]} {
    %c0_i32 = arith.constant 0 : i32
    %0 = arith.cmpi eq, %arg1, %c0_i32 : i32
    %1 = arith.extui %0 : i1 to i32
    %c0_i32_0 = arith.constant 0 : i32
    %2 = arith.cmpi ne, %1, %c0_i32_0 : i32
    scf.if %2 {
      %cst_15 = arith.constant 0.000000e+00 : f32
      %38 = vector.broadcast %cst_15 : f32 to vector<24x1xf32>
      %c0_16 = arith.constant 0 : index
      %c0_17 = arith.constant 0 : index
      %39 = vector.load %arg6[%c0_16, %c0_17] : memref<24x1xf32, #tpu.memory_space<vmem>>, vector<24x1xf32>
      tpu.vector_store %arg6[%c0_16, %c0_17], %38 {strides = array<i32>} : memref<24x1xf32, #tpu.memory_space<vmem>>, vector<24x1xf32>,
    } else {
    }
    %c0 = arith.constant 0 : index
    %c0_1 = arith.constant 0 : index
    %3 = vector.load %arg2[%c0, %c0_1] : memref<24x16xf32, #tpu.memory_space<vmem>>, vector<24x16xf32>
    %c0_2 = arith.constant 0 : index
    %c0_3 = arith.constant 0 : index
    %4 = vector.load %arg4[%c0_2, %c0_3] : memref<1x16xf32, #tpu.memory_space<vmem>>, vector<1x16xf32>
    %c1_i32 = arith.constant 1 : i32
    %5 = arith.muli %arg0, %c1_i32 : i32
    %6 = arith.addi %5, %arg1 : i32
    %c24_i32 = arith.constant 24 : i32
    %7 = arith.muli %6, %c24_i32 : i32
    %8 = tpu.assume_multiple %7, 8 : i32
    %9 = arith.index_cast %8 : i32 to index
    %c0_4 = arith.constant 0 : index
    %10 = vector.load %arg3[%9, %c0_4] : memref<24x1xi32, #tpu.memory_space<vmem>>, vector<24x1xi32>
    %11 = tpu.iota {dimensions = array<i32: 1>} : vector<24x16xi32>
    %12 = vector.broadcast %10 : vector<24x1xi32> to vector<24x16xi32>
    %13 = arith.cmpi eq, %11, %12 : vector<24x16xi32>
    %cst = arith.constant 3.000000e+01 : f32
    %14 = vector.broadcast %cst : f32 to vector<24x16xf32>
    %15 = arith.mulf %14, %3 : vector<24x16xf32>
    %16 = vector.broadcast %4 : vector<1x16xf32> to vector<24x16xf32>
    %17 = arith.subf %15, %16 : vector<24x16xf32>
    %18 = arith.select %13, %17, %15 : vector<24x16xi1>, vector<24x16xf32>
    %cst_5 = arith.constant dense<0xFF800000> : vector<24xf32>
    %19 = vector.multi_reduction <maximumf>, %18, %cst_5 [1] : vector<24x16xf32> to vector<24xf32>
    %20 = vector.shape_cast %19 : vector<24xf32> to vector<24x1xf32>
    %21 = vector.broadcast %20 : vector<24x1xf32> to vector<24x16xf32>
    %22 = arith.subf %18, %21 : vector<24x16xf32>
    %23 = math.exp %22 : vector<24x16xf32>
    %cst_6 = arith.constant dense<0.000000e+00> : vector<24xf32>
    %24 = vector.multi_reduction <add>, %23, %cst_6 [1] : vector<24x16xf32> to vector<24xf32>
    %25 = vector.shape_cast %24 : vector<24xf32> to vector<24x1xf32>
    %cst_7 = arith.constant 0.000000e+00 : f32
    %26 = vector.broadcast %cst_7 : f32 to vector<24x16xf32>
    %27 = arith.select %13, %22, %26 : vector<24x16xi1>, vector<24x16xf32>
    %cst_8 = arith.constant dense<0.000000e+00> : vector<24xf32>
    %28 = vector.multi_reduction <add>, %27, %cst_8 [1] : vector<24x16xf32> to vector<24xf32>
    %29 = vector.shape_cast %28 : vector<24xf32> to vector<24x1xf32>
    %30 = math.log %25 : vector<24x1xf32>
    %31 = arith.subf %30, %29 : vector<24x1xf32>
    %c0_9 = arith.constant 0 : index
    %c0_10 = arith.constant 0 : index
    %32 = vector.load %arg6[%c0_9, %c0_10] : memref<24x1xf32, #tpu.memory_space<vmem>>, vector<24x1xf32>
    %33 = arith.addf %32, %31 : vector<24x1xf32>
    %c0_11 = arith.constant 0 : index
    %c0_12 = arith.constant 0 : index
    %34 = vector.load %arg6[%c0_11, %c0_12] : memref<24x1xf32, #tpu.memory_space<vmem>>, vector<24x1xf32>
    tpu.vector_store %arg6[%c0_11, %c0_12], %33 {strides = array<i32>} : memref<24x1xf32, #tpu.memory_space<vmem>>, vector<24x1xf32>,
    %c0_i32_13 = arith.constant 0 : i32
    %35 = arith.cmpi eq, %arg1, %c0_i32_13 : i32
    %36 = arith.extui %35 : i1 to i32
    %c0_i32_14 = arith.constant 0 : i32
    %37 = arith.cmpi ne, %36, %c0_i32_14 : i32
    scf.if %37 {
      %cst_15 = arith.constant 0.000000e+00 : f32
      %38 = vector.broadcast %cst_15 : f32 to vector<1x8x128xf32>
      %c0_16 = arith.constant 0 : index
      %c0_17 = arith.constant 0 : index
      %39 = vector.load %arg6[%c0_16, %c0_17] : memref<24x1xf32, #tpu.memory_space<vmem>>, vector<24x1xf32>
      %40 = vector.shape_cast %39 : vector<24x1xf32> to vector<1x24x1xf32>
      %cst_18 = arith.constant dense<0.000000e+00> : vector<1xf32>
      %41 = vector.multi_reduction <add>, %40, %cst_18 [1, 2] : vector<1x24x1xf32> to vector<1xf32>
      %42 = vector.shape_cast %41 : vector<1xf32> to vector<1x1x1xf32>
      %43 = vector.extract %42[0, 0, 0] : f32 from vector<1x1x1xf32>
      %44 = vector.broadcast %43 : f32 to vector<1x8x128xf32>
      %45 = arith.addf %38, %44 : vector<1x8x128xf32>
      %c0_19 = arith.constant 0 : index
      %c0_20 = arith.constant 0 : index
      %c0_21 = arith.constant 0 : index
      %46 = vector.load %arg5[%c0_19, %c0_20, %c0_21] : memref<1x8x128xf32, #tpu.memory_space<vmem>>, vector<1x8x128xf32>
      tpu.vector_store %arg5[%c0_19, %c0_20, %c0_21], %45 {strides = array<i32>} : memref<1x8x128xf32, #tpu.memory_space<vmem>>, vector<1x8x128xf32>,
    } else {
    }
    return
  }
  func.func @transform_0(%arg0: i32, %arg1: i32) -> (i32, i32) {
    %c1_i32 = arith.constant 1 : i32
    %0 = arith.muli %arg0, %c1_i32 : i32
    %1 = arith.addi %0, %arg1 : i32
    %c0_i32 = arith.constant 0 : i32
    %c0_i32_0 = arith.constant 0 : i32
    return %1, %c0_i32 : i32, i32
  }
  func.func @transform_1(%arg0: i32, %arg1: i32) -> (i32, i32) {
    %c0_i32 = arith.constant 0 : i32
    %c0_i32_0 = arith.constant 0 : i32
    %c0_i32_1 = arith.constant 0 : i32
    return %c0_i32, %c0_i32_0 : i32, i32
  }
  func.func @transform_2(%arg0: i32, %arg1: i32) -> (i32, i32) {
    %c0_i32 = arith.constant 0 : i32
    %c0_i32_0 = arith.constant 0 : i32
    %c0_i32_1 = arith.constant 0 : i32
    return %c0_i32, %c0_i32_0 : i32, i32
  }
  func.func @transform_3(%arg0: i32, %arg1: i32) -> (i32, i32, i32) {
    %c0_i32 = arith.constant 0 : i32
    %c0_i32_0 = arith.constant 0 : i32
    %c0_i32_1 = arith.constant 0 : i32
    return %arg0, %c0_i32, %c0_i32_0 : i32, i32, i32
  }
}

</mosaic_0001>

<llo_original>
// kernel: tpu_custom_call.1
$region0: #{tpu_custom_call.1}
  #allocation0 [shape = 'u32[]', space=smem, size = 0x4, offset = 0x4, fixed_abs, tag = 'smem constant byte address 0x4 - core index']
  #allocation1 [shape = 'u32[144,128]{1,0:T(1,128)}', space=vmem, size = 0x12000, scoped, tag = 'internal scratch']
  #allocation2 [shape = 'f32[24,1]{1,0:T(8,128)}', space=vmem, size = 0x3000, scoped, tag = 'scratch operand']
  %s0 = inlined_call_operand.vmem [shape: f32[24,16], index: 0, kind: input, shape index: {}]
  %s1 = inlined_call_operand.vmem [shape: s32[24,1], index: 1, kind: input, shape index: {}]
  %s2 = inlined_call_operand.vmem [shape: f32[1,16], index: 2, kind: input, shape index: {}]
  %s3 = inlined_call_operand.hbm [shape: f32[1,8,128], index: 3, kind: output, shape index: {}]
  %s4 = sld [smem:[#allocation0]]
  $region30: #{tpu_custom_call.1} parent=0
    _
  %s6 = ssub.s32 1, %s4
  %s7 = scalar_select 0, %s6, %s4
  $region1: #{tpu_custom_call.1} parent=0
    #allocation3 [shape = 'u8[4096]{0}', space=vmem, size = 0x1000, scoped, tag = 'output window, operand 0, single buffered']
    #allocation4 [shape = 's32[1]{0}', space=sflag, size = 0x4, scoped, tag = 'scoped memory for tpu_custom_call.1']
    %8 = vsyncpa [#allocation4], 0
    // Predicated region
    $region2: #{tpu_custom_call.1} parent=1 // pred_check
      _
    $region3: #{tpu_custom_call.1} parent=1 // pred_check_branch
      %10 = sbr.rel (0) target = $region5
    $region4: #{tpu_custom_call.1} parent=1 // pred_region
      %s11 = sadd.s32 0, 0
      %s12 = smul.u32 3, %s11
      %p13 = scmp.lt.s32.totalorder %s12, 2
      %s14 = scalar_select %p13, %s12, 2
      %s15 = smul.addr %s14, 8
      %s16 = scalar_lea.vmem %s0, %s15
      %s17 = sadd.s32 0, 0
      %s18 = smul.u32 3, %s17
    $region5: #{tpu_custom_call.1} parent=1 // pred_fallthru
      _
    // Predicated region
    $region6: #{tpu_custom_call.1} parent=1 // pred_check
      _
    $region7: #{tpu_custom_call.1} parent=1 // pred_check_branch
      %20 = sbr.rel (0) target = $region9
    $region8: #{tpu_custom_call.1} parent=1 // pred_region
      _
    $region9: #{tpu_custom_call.1} parent=1 // pred_fallthru
      _
    // Predicated region
    $region10: #{tpu_custom_call.1} parent=1 // pred_check
      _
    $region11: #{tpu_custom_call.1} parent=1 // pred_check_branch
      %22 = sbr.rel (0) target = $region13
    $region12: #{tpu_custom_call.1} parent=1 // pred_region
      _
    $region13: #{tpu_custom_call.1} parent=1 // pred_fallthru
      _
    %s23 = sadd.s32 0, 0
    %s24 = smul.u32 3, %s23
    %p25 = scmp.lt.s32.totalorder %s24, 2
    %s26 = scalar_select %p25, %s24, 2
    %s27 = smul.addr %s26, 8
    %s28 = scalar_lea.vmem %s0, %s27
    %s29 = sadd.s32 0, 0
    %s30 = smul.u32 3, %s29
    %p31 = scmp.lt.s32.totalorder %s30, 2
    %s32 = scalar_select %p31, %s30, 2
    %s33 = smul.addr %s32, 8
    %s34 = scalar_lea.vmem %s0, %s33
    %s35 = sadd.s32 0, 0
    %s36 = smul.u32 3, %s35
    %p37 = scmp.eq.s32.totalorder 0, 0
    // Predicated region
    $region14: #{tpu_custom_call.1} parent=1 // pred_check
      %p38 = pneg %p37
    $region15: #{tpu_custom_call.1} parent=1 // pred_check_branch
      %40 = sbr.rel (%p38) target = $region17
    $region16: #{tpu_custom_call.1} parent=1 // pred_region
      %vm41 = vcmask 7168
      %42 = vst.msk [vmem:[#allocation2] sm:$0xff] %vm41, 0.0
      %43 = vst.msk [vmem:[#allocation2 + $0x8] sm:$0xff] %vm41, 0.0
      %44 = vst.msk [vmem:[#allocation2 + $0x10] sm:$0xff] %vm41, 0.0
    $region17: #{tpu_custom_call.1} parent=1 // pred_fallthru
      _
    %v45 = vld [vmem:[%s34] sm:$0xff]
    %v46 = vld [vmem:[%s34 + $0x8] sm:$0xff]
    %v47 = vld [vmem:[%s34 + $0x10] sm:$0xff]
    %v48 = vld [vmem:[%s2] sm:$0x1]
    %s49 = sadd.s32 0, 0
    %s50 = smul.u32 %s49, 24
    %s51 = scalar_lea.vmem %s1, %s50
    %v52 = vld [vmem:[%s51] sm:$0xff]
    %v53 = vld [vmem:[%s51 + $0x8] sm:$0xff]
    %v54 = vld [vmem:[%s51 + $0x10] sm:$0xff]
    %v55 = vlaneseq
    %v56 = vand.u32 %v55, 127
    %57 = vset.pattern.permute.xlu0 0
    %58 = vperm.xlu0 %57, %v52
    %v59 = vpop.permute.xlu0 %58
    %60 = vset.pattern.permute.xlu0 0
    %61 = vperm.xlu0 %60, %v53
    %v62 = vpop.permute.xlu0 %61
    %63 = vset.pattern.permute.xlu0 0
    %64 = vperm.xlu0 %63, %v54
    %v65 = vpop.permute.xlu0 %64
    %vm66 = vcmp.eq.s32.totalorder %v56, %v59
    %vm67 = vcmp.eq.s32.totalorder %v56, %v62
    %vm68 = vcmp.eq.s32.totalorder %v56, %v65
    %v69 = vmul.f32 %v45, 30.0
    %v70 = vmul.f32 %v46, 30.0
    %v71 = vmul.f32 %v47, 30.0
    %v73 = vlaneseq
    %v74 = vshrl.u32 %v73, 7
    %v75 = vsub.s32 0, %v74
    %v76 = vrot.slane %v48, %v75
    %v78 = vsub.f32 %v69, %v76
    %v79 = vsub.f32 %v70, %v76
    %v80 = vsub.f32 %v71, %v76
    %v81 = vsel %vm66, %v78, %v69
    %v82 = vsel %vm67, %v79, %v70
    %v83 = vsel %vm68, %v80, %v71
    %vm84 = vcmask 130048
    %v85 = vsel %vm84, %v81, -inf
    %86 = vmax.xlane.f32.xlu0 %v85
    %v87 = vpop.xlane.xlu0 %86
    %v88 = vsel %vm84, %v82, -inf
    %89 = vmax.xlane.f32.xlu0 %v88
    %v90 = vpop.xlane.xlu0 %89
    %v91 = vsel %vm84, %v83, -inf
    %92 = vmax.xlane.f32.xlu0 %v91
    %v93 = vpop.xlane.xlu0 %92
    %v94 = vsub.f32 %v81, %v87
    %v95 = vsub.f32 %v82, %v90
    %v96 = vsub.f32 %v83, %v93
    %v97 = vmul.f32 %v94, 1.442695
    %v98 = vpow.pop %v97
    %v99 = vmul.f32 %v95, 1.442695
    %v100 = vpow.pop %v99
    %v101 = vmul.f32 %v96, 1.442695
    %v102 = vpow.pop %v101
    %v103 = vsel %vm84, %v98, 0.0
    %104 = vadd.xlane.f32.xlu0 %v103
    %v105 = vpop.xlane.xlu0 %104
    %v106 = vsel %vm84, %v100, 0.0
    %107 = vadd.xlane.f32.xlu0 %v106
    %v108 = vpop.xlane.xlu0 %107
    %v109 = vsel %vm84, %v102, 0.0
    %110 = vadd.xlane.f32.xlu0 %v109
    %v111 = vpop.xlane.xlu0 %110
    %v112 = vsel %vm66, %v94, 0.0
    %v113 = vsel %vm67, %v95, 0.0
    %v114 = vsel %vm68, %v96, 0.0
    %v115 = vsel %vm84, %v112, 0.0
    %116 = vadd.xlane.f32.xlu0 %v115
    %v117 = vpop.xlane.xlu0 %116
    %v118 = vsel %vm84, %v113, 0.0
    %119 = vadd.xlane.f32.xlu0 %v118
    %v120 = vpop.xlane.xlu0 %119
    %v121 = vsel %vm84, %v114, 0.0
    %122 = vadd.xlane.f32.xlu0 %v121
    %v123 = vpop.xlane.xlu0 %122
    %v124 = vlog2.pop %v105
    %v125 = vmul.f32 %v124, 0.6931472
    %v126 = vlog2.pop %v108
    %v127 = vmul.f32 %v126, 0.6931472
    %v128 = vlog2.pop %v111
    %v129 = vmul.f32 %v128, 0.6931472
    %v130 = vsub.f32 %v125, %v117
    %v131 = vsub.f32 %v127, %v120
    %v132 = vsub.f32 %v129, %v123
    %v133 = vld [vmem:[#allocation2] sm:$0xff]
    %v134 = vld [vmem:[#allocation2 + $0x8] sm:$0xff]
    %v135 = vld [vmem:[#allocation2 + $0x10] sm:$0xff]
    %v136 = vadd.f32 %v133, %v130
    %v137 = vadd.f32 %v134, %v131
    %v138 = vadd.f32 %v135, %v132
    %vm139 = vcmask 7168
    %140 = vst.msk [vmem:[#allocation2] sm:$0xff] %vm139, %v136
    %141 = vst.msk [vmem:[#allocation2 + $0x8] sm:$0xff] %vm139, %v137
    %142 = vst.msk [vmem:[#allocation2 + $0x10] sm:$0xff] %vm139, %v138
    // Predicated region
    $region18: #{tpu_custom_call.1} parent=1 // pred_check
      %p143 = pneg %p37
    $region19: #{tpu_custom_call.1} parent=1 // pred_check_branch
      %145 = sbr.rel (%p143) target = $region21
    $region20: #{tpu_custom_call.1} parent=1 // pred_region
      %v146 = vld [vmem:[#allocation2] sm:$0xff]
      %v147 = vld [vmem:[#allocation2 + $0x8] sm:$0xff]
      %v148 = vld [vmem:[#allocation2 + $0x10] sm:$0xff]
      %v149 = vsel %vm139, %v146, 0.0
      %v150 = vsel %vm139, %v147, 0.0
      %v151 = vadd.f32 %v149, %v150
      %v152 = vsel %vm139, %v148, 0.0
      %v153 = vadd.f32 %v151, %v152
      %154 = vadd.xlane.f32.xlu0 %v153
      %v155 = vpop.xlane.xlu0 %154
      %v156 = vrot.slane %v155, 4
      %v157 = vadd.f32 %v155, %v156
      %v158 = vrot.slane %v157, 2
      %v159 = vadd.f32 %v157, %v158
      %v160 = vrot.slane %v159, 1
      %v161 = vadd.f32 %v159, %v160
      %s162 = vtos %v161
      %v163 = vstv %s162
      %v164 = vadd.f32 %v163, 0.0
      %165 = vst [vmem:[#allocation3] sm:$0xff] %v164
    $region21: #{tpu_custom_call.1} parent=1 // pred_fallthru
      _
    // Predicated region
    $region22: #{tpu_custom_call.1} parent=1 // pred_check
      _
    $region23: #{tpu_custom_call.1} parent=1 // pred_check_branch
      %167 = sbr.rel (0) target = $region25
    $region24: #{tpu_custom_call.1} parent=1 // pred_region
      %s169 = ssub.s32 128, 128
      %170 = vsyncadd [#allocation4], %s169
      %s172 = sshll.u32 [#allocation3], 4
      %s173 = int_to_ptr.vmem [resolvable:$true] %s172
      %175 = dma.vmem_to_hbm [thread:$0]  %s173, 128, %s3, [#allocation4]
    $region25: #{tpu_custom_call.1} parent=1 // pred_fallthru
      _
    // Predicated region
    $region26: #{tpu_custom_call.1} parent=1 // pred_check
      _
    $region27: #{tpu_custom_call.1} parent=1 // pred_check_branch
      %177 = sbr.rel (0) target = $region29
    $region28: #{tpu_custom_call.1} parent=1 // pred_region
      %178 = dma.done [#allocation4], 128
    $region29: #{tpu_custom_call.1} parent=1 // pred_fallthru
      _
    %179 = vsyncpa [#allocation4], 1

</llo_original>
